<compile_context>
chip_gen: v7x
topology: tpu7x:2x2x1
jax: 0.10.0
libtpu: 0.0.40
codegen_flags: <defaults>
</compile_context>

<pallas_src>
import functools

import jax
import jax.numpy as jnp
from jax import lax
from jax.experimental import pallas as pl
from jax.experimental.pallas import tpu as pltpu


# ----------------------------- kernels ------------------------------------ #

def _conv_stats_kernel(p_ref, w_ref, conv_ref, stats_ref):
    # p_ref:     [1, K*K*Cin, tile_l]  im2col patches (lane = flattened H*W)
    # w_ref:     [Cout, K*K*Cin]       conv weight, tap-major (resident: index
    #                                  map is constant so it is DMA'd once)
    # conv_ref:  [1, Cout, tile_l]     conv output (lane-dense)
    # stats_ref: [1, 1, Cout, 2]       per-block per-channel (sum, sum_sq)
    p = p_ref[0]
    w = w_ref[...]
    # Single MXU matmul: [Cout, KKCin] x [KKCin, tile_l] -> [Cout, tile_l].
    y = lax.dot_general(w, p,
                        dimension_numbers=(((1,), (0,)), ((), ())),
                        preferred_element_type=jnp.float32)
    conv_ref[0] = y.astype(conv_ref.dtype)
    # Per-channel partial BN statistics: cross-lane reductions go to the XLU
    # slot, the extra multiply rides the VALU slot -> hidden under the MXU.
    s = jnp.sum(y, axis=1, keepdims=True)         # [Cout, 1]
    ss = jnp.sum(y * y, axis=1, keepdims=True)    # [Cout, 1]
    stats_ref[0, 0] = jnp.concatenate([s, ss], axis=1)   # [Cout, 2]


def _make_bn_act_kernel(slope):
    def kernel(conv_ref, ss_ref, o_ref):
        # conv_ref: [1, Cout, tile_l]; ss_ref: [2, Cout, 1] (scale, shift)
        y = conv_ref[0]
        z = y * ss_ref[0] + ss_ref[1]                    # per-channel FMA
        o_ref[0] = jnp.where(z >= 0, z, slope * z).astype(o_ref.dtype)
    return kernel


# ----------------------------- wrapper ------------------------------------ #

def _pick_spatial_tile(L, kkc, cout, *, target=2048, budget_bytes=14 << 20):
    """Spatial (lane) tile: multiple of 128 dividing L, VMEM-budget aware."""
    if L % 128 != 0:
        # Block shape must equal the full dim in this case.
        # TODO(synk): pad L to a multiple of 128 with masked stats if this
        # ever overflows VMEM for huge, non-128-aligned spatial extents.
        return L
    # Per lane column (f32): double-buffered patch column + conv column (in
    # pass 1) and conv in/out columns (pass 2); pass 1 dominates.
    bytes_per_lane = 2 * (kkc + cout) * 4
    t = max(128, min(L, target, (budget_bytes // bytes_per_lane) // 128 * 128))
    while L % t:
        t -= 128
    return t


def skip_block_forward(x_nchw, conv_w, conv_b, bn_gamma, bn_beta, *,
                       kernel_size, eps=1e-5, leaky_slope=0.2,
                       conv_dtype=jnp.float32):
    """SkipBlock forward. x_nchw: [N, Cin, H, W] (PyTorch layout)."""
    # Per-channel conv bias right before training-mode BatchNorm is cancelled
    # exactly by the mean subtraction -> drop it from the compute.
    del conv_b

    N, Cin, H, W = x_nchw.shape
    Cout = conv_w.shape[0]
    K = kernel_size
    stride = 1
    pad = (K - stride + 1) // 2
    Ho = H + 2 * pad - K + 1          # correct for even K as well
    Wo = W + 2 * pad - K + 1
    L = Ho * Wo
    KKC = K * K * Cin

    # --- wrapper glue (XLA): reflection pad + tap-major im2col, NCHW-first ---
    # TODO(synk): reflection pad + halo gather stay as XLA glue; a rectangular
    # BlockSpec cannot express the reflect indexing or overlapping halos.
    # (jnp.pad 'reflect' requires pad < H and pad < W, same as PyTorch.)
    x = x_nchw.astype(jnp.float32)
    x_pad = jnp.pad(x, ((0, 0), (0, 0), (pad, pad), (pad, pad)), mode='reflect')
    taps = []
    for kh in range(K):
        for kw in range(K):
            taps.append(x_pad[:, :, kh:kh + Ho, kw:kw + Wo].reshape(N, Cin, L))
    patches = jnp.concatenate(taps, axis=1).astype(conv_dtype)    # [N, KKC, L]

    # conv weight [Cout, Cin, K, K] -> [Cout, (kh, kw, ci)] (matches patches).
    w2 = jnp.transpose(conv_w, (0, 2, 3, 1)).reshape(Cout, KKC).astype(conv_dtype)

    tile_l = _pick_spatial_tile(L, KKC, Cout)
    T = L // tile_l
    cparams = pltpu.CompilerParams(
        dimension_semantics=("parallel", "parallel"))

    # --- pass 1: conv matmul + per-block channel statistics ---------------- #
    conv, stats = pl.pallas_call(
        _conv_stats_kernel,
        grid=(N, T),
        in_specs=[
            pl.BlockSpec((1, KKC, tile_l), lambda n, t: (n, 0, t)),
            pl.BlockSpec((Cout, KKC), lambda n, t: (0, 0)),
        ],
        out_specs=(
            pl.BlockSpec((1, Cout, tile_l), lambda n, t: (n, 0, t)),
            pl.BlockSpec((1, 1, Cout, 2), lambda n, t: (n, t, 0, 0)),
        ),
        out_shape=(
            jax.ShapeDtypeStruct((N, Cout, L), jnp.float32),
            jax.ShapeDtypeStruct((N, T, Cout, 2), jnp.float32),
        ),
        compiler_params=cparams,
    )(patches, w2)

    # --- tiny global finalize (XLA): fold BN into per-channel scale/shift -- #
    count = jnp.float32(N * L)
    tot = jnp.sum(stats, axis=(0, 1))                        # [Cout, 2]
    mean = tot[:, 0] / count
    var = jnp.maximum(tot[:, 1] / count - mean * mean, 0.0)  # biased variance
    scale = bn_gamma.astype(jnp.float32) * lax.rsqrt(var + eps)
    shift = bn_beta.astype(jnp.float32) - mean * scale
    scale_shift = jnp.stack([scale, shift], axis=0).reshape(2, Cout, 1)

    # --- pass 2: normalize + LeakyReLU, in place over the conv buffer ------ #
    out = pl.pallas_call(
        _make_bn_act_kernel(float(leaky_slope)),
        grid=(N, T),
        in_specs=[
            pl.BlockSpec((1, Cout, tile_l), lambda n, t: (n, 0, t)),
            pl.BlockSpec((2, Cout, 1), lambda n, t: (0, 0, 0)),
        ],
        out_specs=pl.BlockSpec((1, Cout, tile_l), lambda n, t: (n, 0, t)),
        out_shape=jax.ShapeDtypeStruct((N, Cout, L), jnp.float32),
        input_output_aliases={0: 0},
        compiler_params=cparams,
    )(conv, scale_shift)

    return out.reshape(N, Cout, Ho, Wo)        # already NCHW: free reshape


# ----------------------------- reference ----------------------------------- #

def _reference_forward(x_nchw, conv_w, conv_b, bn_gamma, bn_beta, *,
                       kernel_size, eps=1e-5, leaky_slope=0.2):
    """Pure-JAX reference (XLA conv, full BN with bias) for validation."""
    K = kernel_size
    pad = (K - 1 + 1) // 2
    x = jnp.transpose(x_nchw, (0, 2, 3, 1)).astype(jnp.float32)
    x = jnp.pad(x, ((0, 0), (pad, pad), (pad, pad), (0, 0)), mode='reflect')
    w_hwio = jnp.transpose(conv_w, (2, 3, 1, 0)).astype(jnp.float32)
    y = lax.conv_general_dilated(
        x, w_hwio, window_strides=(1, 1), padding='VALID',
        dimension_numbers=('NHWC', 'HWIO', 'NHWC'))
    y = y + conv_b.reshape(1, 1, 1, -1)
    mean = jnp.mean(y, axis=(0, 1, 2), keepdims=True)
    var = jnp.mean((y - mean) ** 2, axis=(0, 1, 2), keepdims=True)
    y = (y - mean) * lax.rsqrt(var + eps)
    y = y * bn_gamma.reshape(1, 1, 1, -1) + bn_beta.reshape(1, 1, 1, -1)
    y = jnp.where(y >= 0, y, leaky_slope * y)
    return jnp.transpose(y, (0, 3, 1, 2))


if __name__ == "__main__":
    # SkipBlock(in_channels=4, out_channels=8, kernel_size=3), small input.
    N, Cin, Cout, H, W, K = 2, 4, 8, 16, 16, 3

    key = jax.random.PRNGKey(0)
    k_x, k_w, k_b, k_g, k_be = jax.random.split(key, 5)

    x = jax.random.normal(k_x, (N, Cin, H, W), dtype=jnp.float32)
    conv_w = jax.random.normal(k_w, (Cout, Cin, K, K), dtype=jnp.float32) * 0.1
    conv_b = jax.random.normal(k_b, (Cout,), dtype=jnp.float32) * 0.1
    bn_gamma = 1.0 + 0.1 * jax.random.normal(k_g, (Cout,), dtype=jnp.float32)
    bn_beta = 0.1 * jax.random.normal(k_be, (Cout,), dtype=jnp.float32)

    fwd = jax.jit(functools.partial(skip_block_forward, kernel_size=K))
    out = jax.block_until_ready(fwd(x, conv_w, conv_b, bn_gamma, bn_beta))

    ref = jax.block_until_ready(
        _reference_forward(x, conv_w, conv_b, bn_gamma, bn_beta, kernel_size=K))

    assert out.shape == (N, Cout, H, W), out.shape
    max_err = float(jnp.max(jnp.abs(out - ref)))
    assert max_err < 1e-3, f"mismatch vs reference: {max_err}"

    print("KERNEL_OK")
</pallas_src>

<mosaic_0001>
module attributes {stable_mosaic.version = 11 : i64} {
  func.func @_conv_stats_kernel(%arg0: i32, %arg1: i32, %arg2: memref<1x36x256xf32, #tpu.memory_space<vmem>>, %arg3: memref<8x36xf32, #tpu.memory_space<vmem>>, %arg4: memref<1x8x256xf32, #tpu.memory_space<vmem>>, %arg5: memref<1x1x8x2xf32, #tpu.memory_space<vmem>>) attributes {dimension_semantics = [#tpu.dimension_semantics<parallel>, #tpu.dimension_semantics<parallel>], iteration_bounds = array<i64: 2, 1>, scalar_prefetch = 0 : i64, scratch_operands = 0 : i64, tpu.core_type = #tpu.core_type<tc>, window_params = [{transform_indices = @transform_0, window_bounds = array<i64: 1, 36, 256>}, {pipeline_mode = #tpu.pipeline_mode<synchronous>, transform_indices = @transform_1, window_bounds = array<i64: 8, 36>}, {transform_indices = @transform_2, window_bounds = array<i64: 1, 8, 256>}, {transform_indices = @transform_3, window_bounds = array<i64: 1, 1, 8, 2>}]} {
    %c0 = arith.constant 0 : index
    %c0_0 = arith.constant 0 : index
    %c0_1 = arith.constant 0 : index
    %0 = vector.load %arg2[%c0, %c0_0, %c0_1] : memref<1x36x256xf32, #tpu.memory_space<vmem>>, vector<1x36x256xf32>
    %1 = vector.shape_cast %0 : vector<1x36x256xf32> to vector<36x256xf32>
    %c0_2 = arith.constant 0 : index
    %c0_3 = arith.constant 0 : index
    %2 = vector.load %arg3[%c0_2, %c0_3] : memref<8x36xf32, #tpu.memory_space<vmem>>, vector<8x36xf32>
    %cst = arith.constant dense<0.000000e+00> : vector<8x256xf32>
    %3 = tpu.matmul %2, %1, %cst {dimension_numbers = #tpu.dot_dimension_numbers<[1], [0], [0], [1], [0, 0, 1, 1], [], []>} : vector<8x36xf32>, vector<36x256xf32>, vector<8x256xf32> -> vector<8x256xf32>
    %c0_4 = arith.constant 0 : index
    %c0_5 = arith.constant 0 : index
    %c0_6 = arith.constant 0 : index
    %4 = vector.load %arg4[%c0_4, %c0_5, %c0_6] : memref<1x8x256xf32, #tpu.memory_space<vmem>>, vector<1x8x256xf32>
    %5 = vector.shape_cast %4 : vector<1x8x256xf32> to vector<8x256xf32>
    %6 = vector.shape_cast %3 : vector<8x256xf32> to vector<1x8x256xf32>
    tpu.vector_store %arg4[%c0_4, %c0_5, %c0_6], %6 {strides = array<i32>} : memref<1x8x256xf32, #tpu.memory_space<vmem>>, vector<1x8x256xf32>,
    %cst_7 = arith.constant dense<0.000000e+00> : vector<8xf32>
    %7 = vector.multi_reduction <add>, %3, %cst_7 [1] : vector<8x256xf32> to vector<8xf32>
    %8 = vector.shape_cast %7 : vector<8xf32> to vector<8x1xf32>
    %9 = arith.mulf %3, %3 : vector<8x256xf32>
    %cst_8 = arith.constant dense<0.000000e+00> : vector<8xf32>
    %10 = vector.multi_reduction <add>, %9, %cst_8 [1] : vector<8x256xf32> to vector<8xf32>
    %11 = vector.shape_cast %10 : vector<8xf32> to vector<8x1xf32>
    %12 = tpu.concatenate %8, %11 in 1 : vector<8x1xf32>, vector<8x1xf32> -> vector<8x2xf32>
    %c0_9 = arith.constant 0 : index
    %c0_10 = arith.constant 0 : index
    %c0_11 = arith.constant 0 : index
    %c0_12 = arith.constant 0 : index
    %13 = vector.load %arg5[%c0_9, %c0_10, %c0_11, %c0_12] : memref<1x1x8x2xf32, #tpu.memory_space<vmem>>, vector<1x1x8x2xf32>
    %14 = vector.shape_cast %13 : vector<1x1x8x2xf32> to vector<8x2xf32>
    %15 = vector.shape_cast %12 : vector<8x2xf32> to vector<1x1x8x2xf32>
    tpu.vector_store %arg5[%c0_9, %c0_10, %c0_11, %c0_12], %15 {strides = array<i32>} : memref<1x1x8x2xf32, #tpu.memory_space<vmem>>, vector<1x1x8x2xf32>,
    return
  }
  func.func @transform_0(%arg0: i32, %arg1: i32) -> (i32, i32, i32) {
    %c0_i32 = arith.constant 0 : i32
    %c0_i32_0 = arith.constant 0 : i32
    return %arg0, %c0_i32, %arg1 : i32, i32, i32
  }
  func.func @transform_1(%arg0: i32, %arg1: i32) -> (i32, i32) {
    %c0_i32 = arith.constant 0 : i32
    %c0_i32_0 = arith.constant 0 : i32
    %c0_i32_1 = arith.constant 0 : i32
    return %c0_i32, %c0_i32_0 : i32, i32
  }
  func.func @transform_2(%arg0: i32, %arg1: i32) -> (i32, i32, i32) {
    %c0_i32 = arith.constant 0 : i32
    %c0_i32_0 = arith.constant 0 : i32
    return %arg0, %c0_i32, %arg1 : i32, i32, i32
  }
  func.func @transform_3(%arg0: i32, %arg1: i32) -> (i32, i32, i32, i32) {
    %c0_i32 = arith.constant 0 : i32
    %c0_i32_0 = arith.constant 0 : i32
    %c0_i32_1 = arith.constant 0 : i32
    return %arg0, %arg1, %c0_i32, %c0_i32_0 : i32, i32, i32, i32
  }
}

module attributes {stable_mosaic.version = 11 : i64} {
  func.func @kernel(%arg0: i32, %arg1: i32, %arg2: memref<1x8x256xf32, #tpu.memory_space<vmem>>, %arg3: memref<2x8x1xf32, #tpu.memory_space<vmem>>, %arg4: memref<1x8x256xf32, #tpu.memory_space<vmem>>) attributes {dimension_semantics = [#tpu.dimension_semantics<parallel>, #tpu.dimension_semantics<parallel>], iteration_bounds = array<i64: 2, 1>, scalar_prefetch = 0 : i64, scratch_operands = 0 : i64, tpu.core_type = #tpu.core_type<tc>, window_params = [{transform_indices = @transform_0, window_bounds = array<i64: 1, 8, 256>}, {pipeline_mode = #tpu.pipeline_mode<synchronous>, transform_indices = @transform_1, window_bounds = array<i64: 2, 8, 1>}, {transform_indices = @transform_2, window_bounds = array<i64: 1, 8, 256>}]} {
    %c0 = arith.constant 0 : index
    %c0_0 = arith.constant 0 : index
    %c0_1 = arith.constant 0 : index
    %0 = vector.load %arg2[%c0, %c0_0, %c0_1] : memref<1x8x256xf32, #tpu.memory_space<vmem>>, vector<1x8x256xf32>
    %1 = vector.shape_cast %0 : vector<1x8x256xf32> to vector<8x256xf32>
    %c0_2 = arith.constant 0 : index
    %c0_3 = arith.constant 0 : index
    %c0_4 = arith.constant 0 : index
    %2 = vector.load %arg3[%c0_2, %c0_3, %c0_4] : memref<2x8x1xf32, #tpu.memory_space<vmem>>, vector<1x8x1xf32>
    %3 = vector.shape_cast %2 : vector<1x8x1xf32> to vector<8x1xf32>
    %4 = vector.broadcast %3 : vector<8x1xf32> to vector<8x256xf32>
    %5 = arith.mulf %1, %4 : vector<8x256xf32>
    %c1 = arith.constant 1 : index
    %c0_5 = arith.constant 0 : index
    %c0_6 = arith.constant 0 : index
    %6 = vector.load %arg3[%c1, %c0_5, %c0_6] : memref<2x8x1xf32, #tpu.memory_space<vmem>>, vector<1x8x1xf32>
    %7 = vector.shape_cast %6 : vector<1x8x1xf32> to vector<8x1xf32>
    %8 = vector.broadcast %7 : vector<8x1xf32> to vector<8x256xf32>
    %9 = arith.addf %5, %8 : vector<8x256xf32>
    %cst = arith.constant 0.000000e+00 : f32
    %10 = vector.broadcast %cst : f32 to vector<8x256xf32>
    %11 = arith.cmpf oge, %9, %10 : vector<8x256xf32>
    %cst_7 = arith.constant 2.000000e-01 : f32
    %12 = vector.broadcast %cst_7 : f32 to vector<8x256xf32>
    %13 = arith.mulf %12, %9 : vector<8x256xf32>
    %14 = arith.select %11, %9, %13 : vector<8x256xi1>, vector<8x256xf32>
    %c0_8 = arith.constant 0 : index
    %c0_9 = arith.constant 0 : index
    %c0_10 = arith.constant 0 : index
    %15 = vector.load %arg4[%c0_8, %c0_9, %c0_10] : memref<1x8x256xf32, #tpu.memory_space<vmem>>, vector<1x8x256xf32>
    %16 = vector.shape_cast %15 : vector<1x8x256xf32> to vector<8x256xf32>
    %17 = vector.shape_cast %14 : vector<8x256xf32> to vector<1x8x256xf32>
    tpu.vector_store %arg4[%c0_8, %c0_9, %c0_10], %17 {strides = array<i32>} : memref<1x8x256xf32, #tpu.memory_space<vmem>>, vector<1x8x256xf32>,
    return
  }
  func.func @transform_0(%arg0: i32, %arg1: i32) -> (i32, i32, i32) {
    %c0_i32 = arith.constant 0 : i32
    %c0_i32_0 = arith.constant 0 : i32
    return %arg0, %c0_i32, %arg1 : i32, i32, i32
  }
  func.func @transform_1(%arg0: i32, %arg1: i32) -> (i32, i32, i32) {
    %c0_i32 = arith.constant 0 : i32
    %c0_i32_0 = arith.constant 0 : i32
    %c0_i32_1 = arith.constant 0 : i32
    %c0_i32_2 = arith.constant 0 : i32
    return %c0_i32, %c0_i32_0, %c0_i32_1 : i32, i32, i32
  }
  func.func @transform_2(%arg0: i32, %arg1: i32) -> (i32, i32, i32) {
    %c0_i32 = arith.constant 0 : i32
    %c0_i32_0 = arith.constant 0 : i32
    return %arg0, %c0_i32, %arg1 : i32, i32, i32
  }
}

</mosaic_0001>

<llo_original>
// kernel: skip_block_forward.3
$region0: #{skip_block_forward.3}
  #allocation0 [shape = 'u32[]', space=smem, size = 0x4, offset = 0x4, fixed_abs, tag = 'smem constant byte address 0x4 - core index']
  #allocation1 [shape = 'u32[144,128]{1,0:T(1,128)}', space=vmem, size = 0x12000, scoped, tag = 'internal scratch']
  %s0 = inlined_call_operand.vmem [shape: f32[2,8,256], index: 0, kind: input, shape index: {}, may-alias: {0,2}]
  %s1 = inlined_call_operand.vmem [shape: f32[2,8,1], index: 1, kind: input, shape index: {}]
  %s2 = inlined_call_operand.vmem [shape: f32[2,8,256], index: 2, kind: output, shape index: {}, may-alias: {0,2}]
  %s3 = sld [smem:[#allocation0]]
  $region41: #{skip_block_forward.3} parent=0
    _
  %s5 = ssub.s32 1, %s3
  %s6 = scalar_select 0, %s5, %s3
  loop: start=0, step=1, limit=4
  $region2: #{skip_block_forward.3} parent=0 // loop_pre_header
    _
  $region3: #{skip_block_forward.3} parent=0 // loop_header
    %s8 = sphi 0, %s12
    %p9 = scmp.ge.s32.totalorder %s8, 4
    %s15 = sphi 0, %s27
    %s16 = sphi 0, %s23
    %s17 = sphi 0, %s15
    %s18 = sphi 0, %s16
    %s19 = sphi 0, %s17
    %s20 = sphi 0, %s18
    %s32 = sphi 0, %s34
    %s35 = sphi 0, %s32
    %s36 = sphi 0, %s35
    %s52 = sphi 0, %s36
    %s56 = sphi 0, %s56
    %s58 = sphi 0, %s56
    %s59 = sphi 0, %s58
    %s73 = sphi 0, %s59
    %s81 = sphi 0, %s83
    %s84 = sphi 0, %s81
    %s85 = sphi 0, %s84
    %s101 = sphi 0, %s85
  $region4: #{skip_block_forward.3} parent=0 // loop_header_branch
    %11 = sbr.rel (%p9) target = $region8
  $region5: #{skip_block_forward.3} parent=0 // loop_body
    %s13 = ssub.s32 %s8, 1
    %s14 = ssub.s32 %s8, 2
    %s21 = sadd.s32 1, %s16
    %p22 = scmp.ge.s32.totalorder %s21, 1
    %s23 = scalar_select %p22, 0, %s21
    %s24 = sadd.s32 1, %s15
    %s25 = scalar_select %p22, %s24, %s15
    %p26 = scmp.ge.s32.totalorder %s25, 2
    %s27 = scalar_select %p26, 0, %s25
    %s28 = ssub.s32 %s15, %s27
    %s29 = ssub.s32 %s16, %s23
    %s30 = sor.u32 %s28, %s29
    %p31 = scmp.eq.s32.totalorder %s30, 0
    %s33 = sadd.s32 %s32, 1
    %s34 = scalar_select %p31, %s32, %s33
    %p37 = pneg %p31
    %p38 = scmp.eq.s32.totalorder %s8, 1
    %p39 = por %p37, %p38
    %p40 = scmp.ne.s32.totalorder %s32, %s35
    %p41 = scmp.eq.s32.totalorder %s8, 0
    %p42 = por %p40, %p41
    %p43 = scmp.ne.s32.totalorder %s32, %s35
    %p44 = scmp.eq.s32.totalorder %s13, 1
    %p45 = por %p43, %p44
    %p46 = scmp.ne.s32.totalorder %s35, %s36
    %p47 = scmp.eq.s32.totalorder %s13, 0
    %p48 = por %p46, %p47
    %p49 = scmp.ne.s32.totalorder %s35, %s36
    %p50 = scmp.eq.s32.totalorder %s14, 1
    %p51 = por %p49, %p50
    %p53 = scmp.ne.s32.totalorder %s36, %s52
    %p54 = scmp.eq.s32.totalorder %s14, 0
    %p55 = por %p53, %p54
    %s57 = sadd.s32 %s56, 1
    %p60 = scmp.eq.s32.totalorder %s8, 1
    %p61 = scmp.ne.s32.totalorder %s56, %s58
    %p62 = scmp.eq.s32.totalorder %s8, 0
    %p63 = por %p61, %p62
    %p64 = scmp.ne.s32.totalorder %s56, %s58
    %p65 = scmp.eq.s32.totalorder %s13, 1
    %p66 = por %p64, %p65
    %p67 = scmp.ne.s32.totalorder %s58, %s59
    %p68 = scmp.eq.s32.totalorder %s13, 0
    %p69 = por %p67, %p68
    %p70 = scmp.ne.s32.totalorder %s58, %s59
    %p71 = scmp.eq.s32.totalorder %s14, 1
    %p72 = por %p70, %p71
    %p74 = scmp.ne.s32.totalorder %s59, %s73
    %p75 = scmp.eq.s32.totalorder %s14, 0
    %p76 = por %p74, %p75
    %s77 = ssub.s32 %s15, %s27
    %s78 = ssub.s32 %s16, %s23
    %s79 = sor.u32 %s77, %s78
    %p80 = scmp.eq.s32.totalorder %s79, 0
    %s82 = sadd.s32 %s81, 1
    %s83 = scalar_select %p80, %s81, %s82
    %p86 = pneg %p80
    %p87 = scmp.eq.s32.totalorder %s8, 1
    %p88 = por %p86, %p87
    %p89 = scmp.ne.s32.totalorder %s81, %s84
    %p90 = scmp.eq.s32.totalorder %s8, 0
    %p91 = por %p89, %p90
    %p92 = scmp.ne.s32.totalorder %s81, %s84
    %p93 = scmp.eq.s32.totalorder %s13, 1
    %p94 = por %p92, %p93
    %p95 = scmp.ne.s32.totalorder %s84, %s85
    %p96 = scmp.eq.s32.totalorder %s13, 0
    %p97 = por %p95, %p96
    %p98 = scmp.ne.s32.totalorder %s84, %s85
    %p99 = scmp.eq.s32.totalorder %s14, 1
    %p100 = por %p98, %p99
    %p102 = scmp.ne.s32.totalorder %s85, %s101
    %p103 = scmp.eq.s32.totalorder %s14, 0
    %p104 = por %p102, %p103
    %p105 = scmp.le.s32.totalorder 1, %s8
    %p106 = scmp.lt.s32.totalorder %s8, 3
    %p107 = pnand %p105, %p106
    %p108 = pneg %p107
    // Predicated region
    $region9: #{skip_block_forward.3} parent=5 // pred_check
      _
    $region10: #{skip_block_forward.3} parent=5 // pred_check_branch
      %110 = sbr.rel (%p107) target = $region12
    $region11: #{skip_block_forward.3} parent=5 // pred_region
      %s111 = ssub.s32 %s8, 1
      // Predicated region
      $region13: #{skip_block_forward.3} parent=11 // pred_check
        %p112 = pneg %p69
      $region14: #{skip_block_forward.3} parent=11 // pred_check_branch
        %114 = sbr.rel (%p112) target = $region16
      $region15: #{skip_block_forward.3} parent=11 // pred_region
        _
      $region16: #{skip_block_forward.3} parent=11 // pred_fallthru
        _
    $region12: #{skip_block_forward.3} parent=5 // pred_fallthru
      _
    %p115 = scmp.lt.s32.totalorder %s8, 2
    // Predicated region
    $region17: #{skip_block_forward.3} parent=5 // pred_check
      %p116 = pneg %p115
    $region18: #{skip_block_forward.3} parent=5 // pred_check_branch
      %118 = sbr.rel (%p116) target = $region20
    $region19: #{skip_block_forward.3} parent=5 // pred_region
      // Predicated region
      $region21: #{skip_block_forward.3} parent=19 // pred_check
        %p119 = pneg %p42
      $region22: #{skip_block_forward.3} parent=19 // pred_check_branch
        %121 = sbr.rel (%p119) target = $region24
      $region23: #{skip_block_forward.3} parent=19 // pred_region
        %s122 = smul.u32 2, %s16
        %p123 = scmp.lt.s32.totalorder %s15, 1
        %s124 = scalar_select %p123, %s15, 1
        %p125 = scmp.lt.s32.totalorder %s122, 1
        %s126 = scalar_select %p125, %s122, 1
        %s127 = smul.addr %s124, 2
        %s128 = sadd.s32 %s126, %s127
        %s129 = smul.addr %s128, 8
        %s130 = scalar_lea.vmem %s0, %s129
        %s131 = smul.u32 2, %s16
      $region24: #{skip_block_forward.3} parent=19 // pred_fallthru
        _
    $region20: #{skip_block_forward.3} parent=5 // pred_fallthru
      _
    %p132 = scmp.le.s32.totalorder 1, %s8
    %p133 = scmp.lt.s32.totalorder %s8, 3
    %p134 = pnand %p132, %p133
    %p135 = pneg %p134
    // Predicated region
    $region25: #{skip_block_forward.3} parent=5 // pred_check
      _
    $region26: #{skip_block_forward.3} parent=5 // pred_check_branch
      %137 = sbr.rel (%p134) target = $region28
    $region27: #{skip_block_forward.3} parent=5 // pred_region
      %s138 = ssub.s32 %s8, 1
      %s139 = smul.u32 2, %s18
      %p140 = scmp.lt.s32.totalorder %s17, 1
      %s141 = scalar_select %p140, %s17, 1
      %p142 = scmp.lt.s32.totalorder %s139, 1
      %s143 = scalar_select %p142, %s139, 1
      %s144 = smul.addr %s141, 2
      %s145 = sadd.s32 %s143, %s144
      %s146 = smul.addr %s145, 8
      %s147 = scalar_lea.vmem %s0, %s146
      %p148 = pneg %p48
      %p149 = pneg %p45
      %p150 = pneg %p69
      %p151 = pneg %p66
      %p152 = pneg %p97
      %p153 = pneg %p94
      %s154 = smul.u32 2, %s18
      %p155 = scmp.lt.s32.totalorder %s17, 1
      %s156 = scalar_select %p155, %s17, 1
      %p157 = scmp.lt.s32.totalorder %s154, 1
      %s158 = scalar_select %p157, %s154, 1
      %s159 = smul.addr %s156, 2
      %s160 = sadd.s32 %s158, %s159
      %s161 = smul.addr %s160, 8
      %s162 = scalar_lea.vmem %s2, %s161
      %s163 = smul.u32 2, %s18
      %p164 = scmp.lt.s32.totalorder %s17, 1
      %s165 = scalar_select %p164, %s17, 1
      %p166 = scmp.lt.s32.totalorder %s163, 1
      %s167 = scalar_select %p166, %s163, 1
      %s168 = smul.addr %s165, 2
      %s169 = sadd.s32 %s167, %s168
      %s170 = smul.addr %s169, 8
      %s171 = scalar_lea.vmem %s0, %s170
      %s172 = smul.u32 2, %s18
      %s173 = smul.u32 2, %s18
      %p174 = scmp.lt.s32.totalorder %s17, 1
      %s175 = scalar_select %p174, %s17, 1
      %p176 = scmp.lt.s32.totalorder %s173, 1
      %s177 = scalar_select %p176, %s173, 1
      %s178 = smul.addr %s175, 2
      %s179 = sadd.s32 %s177, %s178
      %s180 = smul.addr %s179, 8
      %s181 = scalar_lea.vmem %s2, %s180
      %s182 = smul.u32 2, %s18
      %v183 = vld [vmem:[%s171] sm:$0xff]
      %v184 = vld [vmem:[%s171 + $0x8] sm:$0xff]
      %v185 = vld [vmem:[%s1] sm:$0xff]
      %187 = vset.pattern.permute.xlu0 0
      %188 = vperm.xlu0 %187, %v185
      %v189 = vpop.permute.xlu0 %188
      %v191 = vmul.f32 %v183, %v189
      %v192 = vmul.f32 %v184, %v189
      %s193 = scalar_lea.vmem %s1, 8
      %v194 = vld [vmem:[%s193] sm:$0xff]
      %196 = vset.pattern.permute.xlu0 0
      %197 = vperm.xlu0 %196, %v194
      %v198 = vpop.permute.xlu0 %197
      %v200 = vadd.f32 %v191, %v198
      %v201 = vadd.f32 %v192, %v198
      %vm202 = vcmp.ge.f32.partialorder %v200, 0.0
      %vm203 = vcmp.ge.f32.partialorder %v201, 0.0
      %v204 = vmul.f32 %v200, 0.2
      %v205 = vmul.f32 %v201, 0.2
      %v206 = vsel %vm202, %v200, %v204
      %v207 = vsel %vm203, %v201, %v205
      %208 = vst [vmem:[%s181] sm:$0xff] %v206
      %209 = vst [vmem:[%s181 + $0x8] sm:$0xff] %v207
      %s210 = smul.u32 2, %s18
      %p211 = scmp.lt.s32.totalorder %s17, 1
      %s212 = scalar_select %p211, %s17, 1
      %p213 = scmp.lt.s32.totalorder %s210, 1
      %s214 = scalar_select %p213, %s210, 1
      %s215 = smul.addr %s212, 2
      %s216 = sadd.s32 %s214, %s215
      %s217 = smul.addr %s216, 8
      %s218 = scalar_lea.vmem %s2, %s217
      // Predicated region
      $region29: #{skip_block_forward.3} parent=27 // pred_check
        %p219 = pneg %p94
      $region30: #{skip_block_forward.3} parent=27 // pred_check_branch
        %221 = sbr.rel (%p219) target = $region32
      $region31: #{skip_block_forward.3} parent=27 // pred_region
        %s222 = smul.u32 2, %s18
      $region32: #{skip_block_forward.3} parent=27 // pred_fallthru
        _
    $region28: #{skip_block_forward.3} parent=5 // pred_fallthru
      _
    %p223 = scmp.le.s32.totalorder 2, %s8
    // Predicated region
    $region33: #{skip_block_forward.3} parent=5 // pred_check
      %p224 = pneg %p223
    $region34: #{skip_block_forward.3} parent=5 // pred_check_branch
      %226 = sbr.rel (%p224) target = $region36
    $region35: #{skip_block_forward.3} parent=5 // pred_region
      %s227 = ssub.s32 %s8, 2
      // Predicated region
      $region37: #{skip_block_forward.3} parent=35 // pred_check
        %p228 = pneg %p100
      $region38: #{skip_block_forward.3} parent=35 // pred_check_branch
        %230 = sbr.rel (%p228) target = $region40
      $region39: #{skip_block_forward.3} parent=35 // pred_region
        %s231 = smul.u32 2, %s20
        %p232 = scmp.lt.s32.totalorder %s19, 1
        %s233 = scalar_select %p232, %s19, 1
        %p234 = scmp.lt.s32.totalorder %s231, 1
        %s235 = scalar_select %p234, %s231, 1
        %s236 = smul.addr %s233, 2
        %s237 = sadd.s32 %s235, %s236
        %s238 = smul.addr %s237, 8
        %s239 = scalar_lea.vmem %s2, %s238
      $region40: #{skip_block_forward.3} parent=35 // pred_fallthru
        _
    $region36: #{skip_block_forward.3} parent=5 // pred_fallthru
      _
  $region6: #{skip_block_forward.3} parent=0 // loop_footer
    %s12 = sadd.s32 1, %s8
  $region7: #{skip_block_forward.3} parent=0 // loop_footer_branch
    %7 = sbr.rel target = $region3
  $region8: #{skip_block_forward.3} parent=0 // loop_exit
    _

// kernel: skip_block_forward.2
$region0: #{skip_block_forward.2}
  #allocation0 [shape = 'u32[]', space=smem, size = 0x4, offset = 0x4, fixed_abs, tag = 'smem constant byte address 0x4 - core index']
  #allocation1 [shape = 'u32[144,128]{1,0:T(1,128)}', space=vmem, size = 0x12000, scoped, tag = 'internal scratch']
  %s0 = inlined_call_operand.vmem [shape: f32[2,36,256], index: 0, kind: input, shape index: {}]
  %s1 = inlined_call_operand.vmem [shape: f32[8,36], index: 1, kind: input, shape index: {}]
  %s2 = inlined_call_operand.vmem [shape: f32[2,8,256], index: 2, kind: output, shape index: {0}]
  %s3 = inlined_call_operand.vmem [shape: f32[2,1,8,2], index: 3, kind: output, shape index: {1}]
  %4 = xla_tuple %s2, %s3
  %s5 = sld [smem:[#allocation0]]
  $region49: #{skip_block_forward.2} parent=0
    _
  %s7 = ssub.s32 1, %s5
  %s8 = scalar_select 0, %s7, %s5
  loop: start=0, step=1, limit=4
  $region2: #{skip_block_forward.2} parent=0 // loop_pre_header
    _
  $region3: #{skip_block_forward.2} parent=0 // loop_header
    %s10 = sphi 0, %s14
    %p11 = scmp.ge.s32.totalorder %s10, 4
    %s17 = sphi 0, %s29
    %s18 = sphi 0, %s25
    %s19 = sphi 0, %s17
    %s20 = sphi 0, %s18
    %s21 = sphi 0, %s19
    %s22 = sphi 0, %s20
    %s34 = sphi 0, %s36
    %s37 = sphi 0, %s34
    %s38 = sphi 0, %s37
    %s54 = sphi 0, %s38
    %s58 = sphi 0, %s58
    %s60 = sphi 0, %s58
    %s61 = sphi 0, %s60
    %s75 = sphi 0, %s61
    %s83 = sphi 0, %s85
    %s86 = sphi 0, %s83
    %s87 = sphi 0, %s86
    %s103 = sphi 0, %s87
    %s111 = sphi 0, %s113
    %s114 = sphi 0, %s111
    %s115 = sphi 0, %s114
    %s131 = sphi 0, %s115
  $region4: #{skip_block_forward.2} parent=0 // loop_header_branch
    %13 = sbr.rel (%p11) target = $region8
  $region5: #{skip_block_forward.2} parent=0 // loop_body
    %s15 = ssub.s32 %s10, 1
    %s16 = ssub.s32 %s10, 2
    %s23 = sadd.s32 1, %s18
    %p24 = scmp.ge.s32.totalorder %s23, 1
    %s25 = scalar_select %p24, 0, %s23
    %s26 = sadd.s32 1, %s17
    %s27 = scalar_select %p24, %s26, %s17
    %p28 = scmp.ge.s32.totalorder %s27, 2
    %s29 = scalar_select %p28, 0, %s27
    %s30 = ssub.s32 %s17, %s29
    %s31 = ssub.s32 %s18, %s25
    %s32 = sor.u32 %s30, %s31
    %p33 = scmp.eq.s32.totalorder %s32, 0
    %s35 = sadd.s32 %s34, 1
    %s36 = scalar_select %p33, %s34, %s35
    %p39 = pneg %p33
    %p40 = scmp.eq.s32.totalorder %s10, 1
    %p41 = por %p39, %p40
    %p42 = scmp.ne.s32.totalorder %s34, %s37
    %p43 = scmp.eq.s32.totalorder %s10, 0
    %p44 = por %p42, %p43
    %p45 = scmp.ne.s32.totalorder %s34, %s37
    %p46 = scmp.eq.s32.totalorder %s15, 1
    %p47 = por %p45, %p46
    %p48 = scmp.ne.s32.totalorder %s37, %s38
    %p49 = scmp.eq.s32.totalorder %s15, 0
    %p50 = por %p48, %p49
    %p51 = scmp.ne.s32.totalorder %s37, %s38
    %p52 = scmp.eq.s32.totalorder %s16, 1
    %p53 = por %p51, %p52
    %p55 = scmp.ne.s32.totalorder %s38, %s54
    %p56 = scmp.eq.s32.totalorder %s16, 0
    %p57 = por %p55, %p56
    %s59 = sadd.s32 %s58, 1
    %p62 = scmp.eq.s32.totalorder %s10, 1
    %p63 = scmp.ne.s32.totalorder %s58, %s60
    %p64 = scmp.eq.s32.totalorder %s10, 0
    %p65 = por %p63, %p64
    %p66 = scmp.ne.s32.totalorder %s58, %s60
    %p67 = scmp.eq.s32.totalorder %s15, 1
    %p68 = por %p66, %p67
    %p69 = scmp.ne.s32.totalorder %s60, %s61
    %p70 = scmp.eq.s32.totalorder %s15, 0
    %p71 = por %p69, %p70
    %p72 = scmp.ne.s32.totalorder %s60, %s61
    %p73 = scmp.eq.s32.totalorder %s16, 1
    %p74 = por %p72, %p73
    %p76 = scmp.ne.s32.totalorder %s61, %s75
    %p77 = scmp.eq.s32.totalorder %s16, 0
    %p78 = por %p76, %p77
    %s79 = ssub.s32 %s17, %s29
    %s80 = ssub.s32 %s18, %s25
    %s81 = sor.u32 %s79, %s80
    %p82 = scmp.eq.s32.totalorder %s81, 0
    %s84 = sadd.s32 %s83, 1
    %s85 = scalar_select %p82, %s83, %s84
    %p88 = pneg %p82
    %p89 = scmp.eq.s32.totalorder %s10, 1
    %p90 = por %p88, %p89
    %p91 = scmp.ne.s32.totalorder %s83, %s86
    %p92 = scmp.eq.s32.totalorder %s10, 0
    %p93 = por %p91, %p92
    %p94 = scmp.ne.s32.totalorder %s83, %s86
    %p95 = scmp.eq.s32.totalorder %s15, 1
    %p96 = por %p94, %p95
    %p97 = scmp.ne.s32.totalorder %s86, %s87
    %p98 = scmp.eq.s32.totalorder %s15, 0
    %p99 = por %p97, %p98
    %p100 = scmp.ne.s32.totalorder %s86, %s87
    %p101 = scmp.eq.s32.totalorder %s16, 1
    %p102 = por %p100, %p101
    %p104 = scmp.ne.s32.totalorder %s87, %s103
    %p105 = scmp.eq.s32.totalorder %s16, 0
    %p106 = por %p104, %p105
    %s107 = ssub.s32 %s17, %s29
    %s108 = ssub.s32 %s18, %s25
    %s109 = sor.u32 %s107, %s108
    %p110 = scmp.eq.s32.totalorder %s109, 0
    %s112 = sadd.s32 %s111, 1
    %s113 = scalar_select %p110, %s111, %s112
    %p116 = pneg %p110
    %p117 = scmp.eq.s32.totalorder %s10, 1
    %p118 = por %p116, %p117
    %p119 = scmp.ne.s32.totalorder %s111, %s114
    %p120 = scmp.eq.s32.totalorder %s10, 0
    %p121 = por %p119, %p120
    %p122 = scmp.ne.s32.totalorder %s111, %s114
    %p123 = scmp.eq.s32.totalorder %s15, 1
    %p124 = por %p122, %p123
    %p125 = scmp.ne.s32.totalorder %s114, %s115
    %p126 = scmp.eq.s32.totalorder %s15, 0
    %p127 = por %p125, %p126
    %p128 = scmp.ne.s32.totalorder %s114, %s115
    %p129 = scmp.eq.s32.totalorder %s16, 1
    %p130 = por %p128, %p129
    %p132 = scmp.ne.s32.totalorder %s115, %s131
    %p133 = scmp.eq.s32.totalorder %s16, 0
    %p134 = por %p132, %p133
    %p135 = scmp.le.s32.totalorder 1, %s10
    %p136 = scmp.lt.s32.totalorder %s10, 3
    %p137 = pnand %p135, %p136
    %p138 = pneg %p137
    // Predicated region
    $region9: #{skip_block_forward.2} parent=5 // pred_check
      _
    $region10: #{skip_block_forward.2} parent=5 // pred_check_branch
      %140 = sbr.rel (%p137) target = $region12
    $region11: #{skip_block_forward.2} parent=5 // pred_region
      %s141 = ssub.s32 %s10, 1
      // Predicated region
      $region13: #{skip_block_forward.2} parent=11 // pred_check
        %p142 = pneg %p71
      $region14: #{skip_block_forward.2} parent=11 // pred_check_branch
        %144 = sbr.rel (%p142) target = $region16
      $region15: #{skip_block_forward.2} parent=11 // pred_region
        _
      $region16: #{skip_block_forward.2} parent=11 // pred_fallthru
        _
    $region12: #{skip_block_forward.2} parent=5 // pred_fallthru
      _
    %p145 = scmp.lt.s32.totalorder %s10, 2
    // Predicated region
    $region17: #{skip_block_forward.2} parent=5 // pred_check
      %p146 = pneg %p145
    $region18: #{skip_block_forward.2} parent=5 // pred_check_branch
      %148 = sbr.rel (%p146) target = $region20
    $region19: #{skip_block_forward.2} parent=5 // pred_region
      // Predicated region
      $region21: #{skip_block_forward.2} parent=19 // pred_check
        %p149 = pneg %p44
      $region22: #{skip_block_forward.2} parent=19 // pred_check_branch
        %151 = sbr.rel (%p149) target = $region24
      $region23: #{skip_block_forward.2} parent=19 // pred_region
        %s152 = smul.u32 2, %s18
        %p153 = scmp.lt.s32.totalorder %s17, 1
        %s154 = scalar_select %p153, %s17, 1
        %p155 = scmp.lt.s32.totalorder %s152, 1
        %s156 = scalar_select %p155, %s152, 1
        %s157 = smul.addr %s154, 10
        %s158 = sadd.s32 %s156, %s157
        %s159 = smul.addr %s158, 8
        %s160 = scalar_lea.vmem %s0, %s159
        %s161 = smul.u32 2, %s18
      $region24: #{skip_block_forward.2} parent=19 // pred_fallthru
        _
    $region20: #{skip_block_forward.2} parent=5 // pred_fallthru
      _
    %p162 = scmp.le.s32.totalorder 1, %s10
    %p163 = scmp.lt.s32.totalorder %s10, 3
    %p164 = pnand %p162, %p163
    %p165 = pneg %p164
    // Predicated region
    $region25: #{skip_block_forward.2} parent=5 // pred_check
      _
    $region26: #{skip_block_forward.2} parent=5 // pred_check_branch
      %167 = sbr.rel (%p164) target = $region28
    $region27: #{skip_block_forward.2} parent=5 // pred_region
      %s168 = ssub.s32 %s10, 1
      %s169 = smul.u32 2, %s20
      %p170 = scmp.lt.s32.totalorder %s19, 1
      %s171 = scalar_select %p170, %s19, 1
      %p172 = scmp.lt.s32.totalorder %s169, 1
      %s173 = scalar_select %p172, %s169, 1
      %s174 = smul.addr %s171, 10
      %s175 = sadd.s32 %s173, %s174
      %s176 = smul.addr %s175, 8
      %s177 = scalar_lea.vmem %s0, %s176
      %p178 = pneg %p50
      %p179 = pneg %p47
      %p180 = pneg %p71
      %p181 = pneg %p68
      %p182 = pneg %p99
      %p183 = pneg %p96
      %s184 = smul.u32 2, %s20
      %p185 = scmp.lt.s32.totalorder %s19, 1
      %s186 = scalar_select %p185, %s19, 1
      %p187 = scmp.lt.s32.totalorder %s184, 1
      %s188 = scalar_select %p187, %s184, 1
      %s189 = smul.addr %s186, 2
      %s190 = sadd.s32 %s188, %s189
      %s191 = smul.addr %s190, 8
      %s192 = scalar_lea.vmem %s2, %s191
      %p193 = pneg %p127
      %p194 = pneg %p124
      %p195 = scmp.lt.s32.totalorder %s19, 1
      %s196 = scalar_select %p195, %s19, 1
      %p197 = scmp.lt.s32.totalorder %s20, 0
      %s198 = scalar_select %p197, %s20, 0
      %s199 = sadd.s32 %s198, %s196
      %s200 = smul.addr %s199, 8
      %s201 = scalar_lea.vmem %s3, %s200
      %s202 = smul.u32 2, %s20
      %p203 = scmp.lt.s32.totalorder %s19, 1
      %s204 = scalar_select %p203, %s19, 1
      %p205 = scmp.lt.s32.totalorder %s202, 1
      %s206 = scalar_select %p205, %s202, 1
      %s207 = smul.addr %s204, 10
      %s208 = sadd.s32 %s206, %s207
      %s209 = smul.addr %s208, 8
      %s210 = scalar_lea.vmem %s0, %s209
      %s211 = smul.u32 2, %s20
      %s212 = smul.u32 2, %s20
      %p213 = scmp.lt.s32.totalorder %s19, 1
      %s214 = scalar_select %p213, %s19, 1
      %p215 = scmp.lt.s32.totalorder %s212, 1
      %s216 = scalar_select %p215, %s212, 1
      %s217 = smul.addr %s214, 2
      %s218 = sadd.s32 %s216, %s217
      %s219 = smul.addr %s218, 8
      %s220 = scalar_lea.vmem %s2, %s219
      %s221 = smul.u32 2, %s20
      %p222 = scmp.lt.s32.totalorder %s19, 1
      %s223 = scalar_select %p222, %s19, 1
      %p224 = scmp.lt.s32.totalorder %s20, 0
      %s225 = scalar_select %p224, %s20, 0
      %s226 = sadd.s32 %s225, %s223
      %s227 = smul.addr %s226, 8
      %s228 = scalar_lea.vmem %s3, %s227
      %v229 = vld [vmem:[%s210] sm:$0xff]
      %v230 = vld [vmem:[%s210 + $0x8] sm:$0xff]
      %v231 = vld [vmem:[%s210 + $0x10] sm:$0xff]
      %v232 = vld [vmem:[%s210 + $0x18] sm:$0xff]
      %v233 = vld [vmem:[%s210 + $0x20] sm:$0xff]
      %v234 = vld [vmem:[%s210 + $0x28] sm:$0xff]
      %v235 = vld [vmem:[%s210 + $0x30] sm:$0xff]
      %v236 = vld [vmem:[%s210 + $0x38] sm:$0xff]
      %v237 = vld [vmem:[%s210 + $0x40] sm:$0xf]
      %v238 = vld [vmem:[%s210 + $0x48] sm:$0xf]
      %v239 = vld [vmem:[%s1] sm:$0xff]
      %vm240 = vcmask 293888
      %v242 = vsel %vm240, %v239, 0
      %vm244 = vcmask 1043456
      %v246 = vsel %vm244, %v237, 0
      %v249 = vsel %vm244, %v238, 0
      %251 = vmatprep.subr.mxu0 %v230
      %252 = vmatpush1.msra.mxu0 %v229
      %253 = vmatprep.subr.mxu0 %v232
      %254 = vmatpush1.msra.mxu0 %v231
      %255 = vmatprep.subr.mxu0 %v234
      %256 = vmatpush1.msra.mxu0 %v233
      %257 = vmatprep.subr.mxu0 %v236
      %258 = vmatpush1.msra.mxu0 %v235
      %259 = vmatprep.subr.mxu0 %v249
      %260 = vmatpush1.msra.mxu0 %v246
      %261 = vmatprep.subr.mxu0 0.0
      %262 = vmatpush1.msra.mxu0 0.0
      %263 = vmatprep.subr.mxu0 0.0
      %264 = vmatpush1.msra.mxu0 0.0
      %265 = vmatprep.subr.mxu0 0.0
      %266 = vmatpush1.msra.mxu0 0.0
      %267 = vmatprep.subr.mxu0 0.0
      %268 = vmatpush1.msra.mxu0 0.0
      %269 = vmatprep.subr.mxu0 0.0
      %270 = vmatpush1.msra.mxu0 0.0
      %271 = vmatprep.subr.mxu0 0.0
      %272 = vmatpush1.msra.mxu0 0.0
      %273 = vmatprep.subr.mxu0 0.0
      %274 = vmatpush1.msra.mxu0 0.0
      %275 = vmatprep.subr.mxu0 0.0
      %276 = vmatpush1.msra.mxu0 0.0
      %277 = vmatprep.subr.mxu0 0.0
      %278 = vmatpush1.msra.mxu0 0.0
      %279 = vmatprep.subr.mxu0 0.0
      %280 = vmatpush1.msra.mxu0 0.0
      %281 = vmatprep.subr.mxu0 0.0
      %282 = vmatpush1.msra.mxu0 0.0
      %283 = vmatprep.subr.mxu0 0.0
      %284 = vmatpush1.msra.mxu0 0.0
      %285 = vmatprep.subr.mxu0 0.0
      %286 = vmatpush1.msra.mxu0 0.0
      %287 = vmatprep.subr.mxu0 0.0
      %288 = vmatpush1.msra.mxu0 0.0
      %289 = vmatprep.subr.mxu0 0.0
      %290 = vmatpush1.msra.mxu0 0.0
      %291 = vmatprep.subr.mxu0 0.0
      %292 = vmatpush1.msra.mxu0 0.0
      %293 = vmatprep.subr.mxu0 0.0
      %294 = vmatpush1.msra.mxu0 0.0
      %295 = vmatprep.subr.mxu0 0.0
      %296 = vmatpush1.msra.mxu0 0.0
      %297 = vmatprep.subr.mxu0 0.0
      %298 = vmatpush1.msra.mxu0 0.0
      %299 = vmatprep.subr.mxu0 0.0
      %300 = vmatpush1.msra.mxu0 0.0
      %301 = vmatprep.subr.mxu0 0.0
      %302 = vmatpush1.msra.mxu0 0.0
      %303 = vmatprep.subr.mxu0 0.0
      %304 = vmatpush1.msra.mxu0 0.0
      %305 = vmatprep.subr.mxu0 0.0
      %306 = vmatpush1.msra.mxu0 0.0
      %307 = vmatprep.subr.mxu0 0.0
      %308 = vmatpush1.msra.mxu0 0.0
      %309 = vmatprep.subr.mxu0 0.0
      %310 = vmatpush1.msra.mxu0 0.0
      %311 = vmatprep.subr.mxu0 0.0
      %312 = vmatpush1.msra.mxu0 0.0
      %313 = vmatprep.subr.mxu0 0.0
      %314 = vmatpush1.msra.mxu0 0.0
      %315 = vmatprep.mubr.f32.mxu0 0.0
      %316 = vmatmul.mubr.f32.gmra.mrb[0].mxu0 %v242
      %v317 = vpop.f32.mrb[0].mxu0
      %v318 = vadd.f32 0.0, %v317
      %v319 = vpop.f32.mrb[0].mxu0
      %v320 = vadd.f32 0.0, %v319
      %321 = vdwg.mxu0
      %322 = vst [vmem:[%s220] sm:$0xff] %v318
      %323 = vst [vmem:[%s220 + $0x8] sm:$0xff] %v320
      %v324 = vadd.f32 %v318, %v320
      %325 = vadd.xlane.f32.xlu0 %v324
      %v326 = vpop.xlane.xlu0 %325
      %v327 = vmul.f32 %v318, %v318
      %v328 = vmul.f32 %v320, %v320
      %v329 = vadd.f32 %v327, %v328
      %330 = vadd.xlane.f32.xlu0 %v329
      %v331 = vpop.xlane.xlu0 %330
      %vm332 = vcmask 7168
      %v333 = vsel %vm332, %v326, %v331
      %vm334 = vcmask 15360
      %335 = vst.msk [vmem:[%s228] sm:$0xff] %vm334, %v333
      %s336 = smul.u32 2, %s20
      %p337 = scmp.lt.s32.totalorder %s19, 1
      %s338 = scalar_select %p337, %s19, 1
      %p339 = scmp.lt.s32.totalorder %s336, 1
      %s340 = scalar_select %p339, %s336, 1
      %s341 = smul.addr %s338, 2
      %s342 = sadd.s32 %s340, %s341
      %s343 = smul.addr %s342, 8
      %s344 = scalar_lea.vmem %s2, %s343
      %p345 = scmp.lt.s32.totalorder %s19, 1
      %s346 = scalar_select %p345, %s19, 1
      %p347 = scmp.lt.s32.totalorder %s20, 0
      %s348 = scalar_select %p347, %s20, 0
      %s349 = sadd.s32 %s348, %s346
      %s350 = smul.addr %s349, 8
      %s351 = scalar_lea.vmem %s3, %s350
      // Predicated region
      $region29: #{skip_block_forward.2} parent=27 // pred_check
        %p352 = pneg %p96
      $region30: #{skip_block_forward.2} parent=27 // pred_check_branch
        %354 = sbr.rel (%p352) target = $region32
      $region31: #{skip_block_forward.2} parent=27 // pred_region
        %s355 = smul.u32 2, %s20
      $region32: #{skip_block_forward.2} parent=27 // pred_fallthru
        _
      // Predicated region
      $region33: #{skip_block_forward.2} parent=27 // pred_check
        %p356 = pneg %p124
      $region34: #{skip_block_forward.2} parent=27 // pred_check_branch
        %358 = sbr.rel (%p356) target = $region36
      $region35: #{skip_block_forward.2} parent=27 // pred_region
        _
      $region36: #{skip_block_forward.2} parent=27 // pred_fallthru
        _
    $region28: #{skip_block_forward.2} parent=5 // pred_fallthru
      _
    %p359 = scmp.le.s32.totalorder 2, %s10
    // Predicated region
    $region37: #{skip_block_forward.2} parent=5 // pred_check
      %p360 = pneg %p359
    $region38: #{skip_block_forward.2} parent=5 // pred_check_branch
      %362 = sbr.rel (%p360) target = $region40
    $region39: #{skip_block_forward.2} parent=5 // pred_region
      %s363 = ssub.s32 %s10, 2
      // Predicated region
      $region41: #{skip_block_forward.2} parent=39 // pred_check
        %p364 = pneg %p102
      $region42: #{skip_block_forward.2} parent=39 // pred_check_branch
        %366 = sbr.rel (%p364) target = $region44
      $region43: #{skip_block_forward.2} parent=39 // pred_region
        %s367 = smul.u32 2, %s22
        %p368 = scmp.lt.s32.totalorder %s21, 1
        %s369 = scalar_select %p368, %s21, 1
        %p370 = scmp.lt.s32.totalorder %s367, 1
        %s371 = scalar_select %p370, %s367, 1
        %s372 = smul.addr %s369, 2
        %s373 = sadd.s32 %s371, %s372
        %s374 = smul.addr %s373, 8
        %s375 = scalar_lea.vmem %s2, %s374
      $region44: #{skip_block_forward.2} parent=39 // pred_fallthru
        _
      // Predicated region
      $region45: #{skip_block_forward.2} parent=39 // pred_check
        %p376 = pneg %p130
      $region46: #{skip_block_forward.2} parent=39 // pred_check_branch
        %378 = sbr.rel (%p376) target = $region48
      $region47: #{skip_block_forward.2} parent=39 // pred_region
        %p379 = scmp.lt.s32.totalorder %s21, 1
        %s380 = scalar_select %p379, %s21, 1
        %p381 = scmp.lt.s32.totalorder %s22, 0
        %s382 = scalar_select %p381, %s22, 0
        %s383 = sadd.s32 %s382, %s380
        %s384 = smul.addr %s383, 8
        %s385 = scalar_lea.vmem %s3, %s384
      $region48: #{skip_block_forward.2} parent=39 // pred_fallthru
        _
    $region40: #{skip_block_forward.2} parent=5 // pred_fallthru
      _
  $region6: #{skip_block_forward.2} parent=0 // loop_footer
    %s14 = sadd.s32 1, %s10
  $region7: #{skip_block_forward.2} parent=0 // loop_footer_branch
    %9 = sbr.rel target = $region3
  $region8: #{skip_block_forward.2} parent=0 // loop_exit
    _

</llo_original>
